<compile_context>
chip_gen: v7x
topology: tpu7x:2x2x1
jax: 0.10.0
libtpu: 0.0.40
codegen_flags: <defaults>
</compile_context>

<pallas_src>
import jax
import jax.numpy as jnp
from jax import lax
from jax.experimental import pallas as pl
from jax.experimental.pallas import tpu as pltpu


def _round_up(x, m):
    return (x + m - 1) // m * m


def adapter_kernel(x_ref, wd_ref, bd_ref, wu_ref, bu_ref, o_ref):
    # x_ref : (tm, D) tile of flattened input rows
    # wd_ref: (B, D)  down-projection weight, PyTorch [out, in] layout
    # bd_ref: (1, B)  down-projection bias
    # wu_ref: (D, B)  up-projection weight, PyTorch [out, in] layout
    # bu_ref: (1, D)  up-projection bias
    x = x_ref[...].astype(jnp.float32)
    # h = x @ w_down.T : contract x's dim 1 (D) with w_down's dim 1 (D).
    h = lax.dot_general(x, wd_ref[...], (((1,), (1,)), ((), ())),
                        preferred_element_type=jnp.float32)
    h = jnp.maximum(h + bd_ref[...].astype(jnp.float32), 0.0)      # ReLU on the VPU
    # y = h @ w_up.T : contract h's dim 1 (B) with w_up's dim 1 (B).
    y = lax.dot_general(h, wu_ref[...], (((1,), (1,)), ((), ())),
                        preferred_element_type=jnp.float32)
    o_ref[...] = (y + bu_ref[...].astype(jnp.float32) + x).astype(o_ref.dtype)


def adapter_forward(x, w_down, b_down, w_up, b_up, *, tm=None):
    """Adapter forward: relu(x @ w_down.T + b_down) @ w_up.T + b_up + x.

    x:      [batch, seq, D]
    w_down: [B, D]   (PyTorch nn.Linear layout: [out_features, in_features])
    b_down: [B]
    w_up:   [D, B]
    b_up:   [D]
    """
    batch, seq, D = x.shape
    B = w_down.shape[0]
    M = batch * seq
    itemsize = jnp.dtype(x.dtype).itemsize

    # ---- Tile-size selection (memory-bound: as large as VMEM safely allows) ----
    if tm is None:
        # Double-buffered x + out tiles must fit comfortably on every generation
        # (v7x has only 64 MiB physical VMEM).  Budget ~24 MiB for streaming tiles.
        tile_budget = 24 * 1024 * 1024
        per_row = 2 * 2 * D * itemsize            # (x + out) x double-buffer, per row
        tm = min(1024, max(8, tile_budget // per_row))
    # Never larger than the (padded) problem; keep it a multiple of 8 sublanes.
    tm = max(8, _round_up(min(tm, _round_up(M, 8)), 8))

    # Pad rows so the grid covers everything (fixes the M % tm truncation bug).
    Mp = _round_up(M, tm)
    x2 = x.reshape(M, D)
    if Mp != M:
        x2 = jnp.pad(x2, ((0, Mp - M), (0, 0)))

    bd = jnp.asarray(b_down).reshape(1, B)
    bu = jnp.asarray(b_up).reshape(1, D)

    # Raise the scoped VMEM limit above the 32 MiB default when big tiles need it,
    # but never above v7x's 64 MiB physical VMEM.
    w_item = jnp.dtype(w_down.dtype).itemsize
    est_bytes = (2 * 2 * tm * D * itemsize            # x + out, double-buffered
                 + 2 * B * D * w_item                 # both weights
                 + (B + D) * 4 + (1 << 20))           # biases + slack
    vmem_limit = int(min(64 * 1024 * 1024, max(32 * 1024 * 1024, est_bytes * 2)))

    grid = (Mp // tm,)
    out = pl.pallas_call(
        adapter_kernel,
        out_shape=jax.ShapeDtypeStruct((Mp, D), x.dtype),
        grid_spec=pltpu.PrefetchScalarGridSpec(
            num_scalar_prefetch=0,
            grid=grid,
            in_specs=[
                pl.BlockSpec((tm, D), lambda i: (i, 0)),   # x tile (streamed)
                pl.BlockSpec((B, D), lambda i: (0, 0)),    # w_down (resident, untransposed)
                pl.BlockSpec((1, B), lambda i: (0, 0)),    # b_down
                pl.BlockSpec((D, B), lambda i: (0, 0)),    # w_up   (resident, untransposed)
                pl.BlockSpec((1, D), lambda i: (0, 0)),    # b_up
            ],
            out_specs=pl.BlockSpec((tm, D), lambda i: (i, 0)),
        ),
        compiler_params=pltpu.CompilerParams(
            dimension_semantics=("parallel",),
            vmem_limit_bytes=vmem_limit),
    )(x2, w_down, bd, w_up, bu)

    if Mp != M:
        out = out[:M]
    return out.reshape(batch, seq, D)


def _reference(x, w_down, b_down, w_up, b_up):
    h = jnp.maximum(x @ w_down.T + b_down, 0.0)
    return h @ w_up.T + b_up + x


if __name__ == "__main__":
    # Small shapes consistent with the module's forward.
    batch, seq = 2, 8
    num_feedforward_nodes = 32   # D
    bottleneck_size = 8          # B (module-level global in the original code)

    key = jax.random.PRNGKey(0)
    kx, kwd, kbd, kwu, kbu = jax.random.split(key, 5)

    x = jax.random.normal(kx, (batch, seq, num_feedforward_nodes), dtype=jnp.float32)
    # PyTorch Linear shapes: weight [out, in], bias [out].
    w_down = jax.random.normal(kwd, (bottleneck_size, num_feedforward_nodes), jnp.float32) * 0.1
    b_down = jax.random.normal(kbd, (bottleneck_size,), jnp.float32) * 0.1
    w_up = jax.random.normal(kwu, (num_feedforward_nodes, bottleneck_size), jnp.float32) * 0.1
    b_up = jax.random.normal(kbu, (num_feedforward_nodes,), jnp.float32) * 0.1

    out = adapter_forward(x, w_down, b_down, w_up, b_up)
    out = jax.block_until_ready(out)

    ref = _reference(x, w_down, b_down, w_up, b_up)
    assert out.shape == ref.shape
    assert jnp.allclose(out, ref, atol=1e-5, rtol=1e-5), "mismatch vs reference"

    # Exercise the padded-tail path (M = 2*7 = 14 not a multiple of 8/tm).
    x_odd = jax.random.normal(kx, (2, 7, num_feedforward_nodes), dtype=jnp.float32)
    out_odd = jax.block_until_ready(adapter_forward(x_odd, w_down, b_down, w_up, b_up))
    ref_odd = _reference(x_odd, w_down, b_down, w_up, b_up)
    assert out_odd.shape == ref_odd.shape
    assert jnp.allclose(out_odd, ref_odd, atol=1e-5, rtol=1e-5), "mismatch on padded tail"

    print("KERNEL_OK")
</pallas_src>

<mosaic_0001>
module attributes {stable_mosaic.version = 11 : i64} {
  func.func @adapter_kernel(%arg0: i32, %arg1: memref<16x32xf32, #tpu.memory_space<vmem>>, %arg2: memref<8x32xf32, #tpu.memory_space<vmem>>, %arg3: memref<1x8xf32, #tpu.memory_space<vmem>>, %arg4: memref<32x8xf32, #tpu.memory_space<vmem>>, %arg5: memref<1x32xf32, #tpu.memory_space<vmem>>, %arg6: memref<16x32xf32, #tpu.memory_space<vmem>>) attributes {dimension_semantics = [#tpu.dimension_semantics<parallel>], iteration_bounds = array<i64: 1>, scalar_prefetch = 0 : i64, scratch_operands = 0 : i64, tpu.core_type = #tpu.core_type<tc>, window_params = [{transform_indices = @transform_0, window_bounds = array<i64: 16, 32>}, {pipeline_mode = #tpu.pipeline_mode<synchronous>, transform_indices = @transform_1, window_bounds = array<i64: 8, 32>}, {pipeline_mode = #tpu.pipeline_mode<synchronous>, transform_indices = @transform_2, window_bounds = array<i64: 1, 8>}, {pipeline_mode = #tpu.pipeline_mode<synchronous>, transform_indices = @transform_3, window_bounds = array<i64: 32, 8>}, {pipeline_mode = #tpu.pipeline_mode<synchronous>, transform_indices = @transform_4, window_bounds = array<i64: 1, 32>}, {transform_indices = @transform_5, window_bounds = array<i64: 16, 32>}]} {
    %c0 = arith.constant 0 : index
    %c0_0 = arith.constant 0 : index
    %0 = vector.load %arg1[%c0, %c0_0] : memref<16x32xf32, #tpu.memory_space<vmem>>, vector<16x32xf32>
    %c0_1 = arith.constant 0 : index
    %c0_2 = arith.constant 0 : index
    %1 = vector.load %arg2[%c0_1, %c0_2] : memref<8x32xf32, #tpu.memory_space<vmem>>, vector<8x32xf32>
    %cst = arith.constant dense<0.000000e+00> : vector<16x8xf32>
    %2 = tpu.matmul %0, %1, %cst {dimension_numbers = #tpu.dot_dimension_numbers<[1], [1], [0], [0], [0, 0, 1, 0], [], []>} : vector<16x32xf32>, vector<8x32xf32>, vector<16x8xf32> -> vector<16x8xf32>
    %c0_3 = arith.constant 0 : index
    %c0_4 = arith.constant 0 : index
    %3 = vector.load %arg3[%c0_3, %c0_4] : memref<1x8xf32, #tpu.memory_space<vmem>>, vector<1x8xf32>
    %4 = vector.broadcast %3 : vector<1x8xf32> to vector<16x8xf32>
    %5 = arith.addf %2, %4 : vector<16x8xf32>
    %cst_5 = arith.constant 0.000000e+00 : f32
    %6 = vector.broadcast %cst_5 : f32 to vector<16x8xf32>
    %7 = arith.maximumf %5, %6 : vector<16x8xf32>
    %c0_6 = arith.constant 0 : index
    %c0_7 = arith.constant 0 : index
    %8 = vector.load %arg4[%c0_6, %c0_7] : memref<32x8xf32, #tpu.memory_space<vmem>>, vector<32x8xf32>
    %cst_8 = arith.constant dense<0.000000e+00> : vector<16x32xf32>
    %9 = tpu.matmul %7, %8, %cst_8 {dimension_numbers = #tpu.dot_dimension_numbers<[1], [1], [0], [0], [0, 0, 1, 0], [], []>} : vector<16x8xf32>, vector<32x8xf32>, vector<16x32xf32> -> vector<16x32xf32>
    %c0_9 = arith.constant 0 : index
    %c0_10 = arith.constant 0 : index
    %10 = vector.load %arg5[%c0_9, %c0_10] : memref<1x32xf32, #tpu.memory_space<vmem>>, vector<1x32xf32>
    %11 = vector.broadcast %10 : vector<1x32xf32> to vector<16x32xf32>
    %12 = arith.addf %9, %11 : vector<16x32xf32>
    %13 = arith.addf %12, %0 : vector<16x32xf32>
    %c0_11 = arith.constant 0 : index
    %c0_12 = arith.constant 0 : index
    %14 = vector.load %arg6[%c0_11, %c0_12] : memref<16x32xf32, #tpu.memory_space<vmem>>, vector<16x32xf32>
    tpu.vector_store %arg6[%c0_11, %c0_12], %13 {strides = array<i32>} : memref<16x32xf32, #tpu.memory_space<vmem>>, vector<16x32xf32>,
    return
  }
  func.func @transform_0(%arg0: i32) -> (i32, i32) {
    %c0_i32 = arith.constant 0 : i32
    %c0_i32_0 = arith.constant 0 : i32
    return %arg0, %c0_i32 : i32, i32
  }
  func.func @transform_1(%arg0: i32) -> (i32, i32) {
    %c0_i32 = arith.constant 0 : i32
    %c0_i32_0 = arith.constant 0 : i32
    %c0_i32_1 = arith.constant 0 : i32
    return %c0_i32, %c0_i32_0 : i32, i32
  }
  func.func @transform_2(%arg0: i32) -> (i32, i32) {
    %c0_i32 = arith.constant 0 : i32
    %c0_i32_0 = arith.constant 0 : i32
    %c0_i32_1 = arith.constant 0 : i32
    return %c0_i32, %c0_i32_0 : i32, i32
  }
  func.func @transform_3(%arg0: i32) -> (i32, i32) {
    %c0_i32 = arith.constant 0 : i32
    %c0_i32_0 = arith.constant 0 : i32
    %c0_i32_1 = arith.constant 0 : i32
    return %c0_i32, %c0_i32_0 : i32, i32
  }
  func.func @transform_4(%arg0: i32) -> (i32, i32) {
    %c0_i32 = arith.constant 0 : i32
    %c0_i32_0 = arith.constant 0 : i32
    %c0_i32_1 = arith.constant 0 : i32
    return %c0_i32, %c0_i32_0 : i32, i32
  }
  func.func @transform_5(%arg0: i32) -> (i32, i32) {
    %c0_i32 = arith.constant 0 : i32
    %c0_i32_0 = arith.constant 0 : i32
    return %arg0, %c0_i32 : i32, i32
  }
}

</mosaic_0001>

<llo_original>
// kernel: tpu_custom_call.1
$region0: #{tpu_custom_call.1}
  #allocation0 [shape = 'u32[]', space=smem, size = 0x4, offset = 0x4, fixed_abs, tag = 'smem constant byte address 0x4 - core index']
  #allocation1 [shape = 'u32[144,128]{1,0:T(1,128)}', space=vmem, size = 0x12000, scoped, tag = 'internal scratch']
  %s0 = inlined_call_operand.vmem [shape: f32[16,32], index: 0, kind: input, shape index: {}]
  %s1 = inlined_call_operand.vmem [shape: f32[8,32], index: 1, kind: input, shape index: {}]
  %s2 = inlined_call_operand.vmem [shape: f32[1,8], index: 2, kind: input, shape index: {}]
  %s3 = inlined_call_operand.vmem [shape: f32[32,8], index: 3, kind: input, shape index: {}]
  %s4 = inlined_call_operand.vmem [shape: f32[1,32], index: 4, kind: input, shape index: {}]
  %s5 = inlined_call_operand.hbm [shape: f32[16,32], index: 5, kind: output, shape index: {}]
  %s6 = sld [smem:[#allocation0]]
  $region30: #{tpu_custom_call.1} parent=0
    _
  %s8 = ssub.s32 1, %s6
  %s9 = scalar_select 0, %s8, %s6
  $region1: #{tpu_custom_call.1} parent=0
    #allocation2 [shape = 'u8[8192]{0}', space=vmem, size = 0x2000, scoped, tag = 'output window, operand 0, single buffered']
    #allocation3 [shape = 's32[1]{0}', space=sflag, size = 0x4, scoped, tag = 'scoped memory for tpu_custom_call.1']
    %10 = vsyncpa [#allocation3], 0
    // Predicated region
    $region2: #{tpu_custom_call.1} parent=1 // pred_check
      _
    $region3: #{tpu_custom_call.1} parent=1 // pred_check_branch
      %12 = sbr.rel (0) target = $region5
    $region4: #{tpu_custom_call.1} parent=1 // pred_region
      _
    $region5: #{tpu_custom_call.1} parent=1 // pred_fallthru
      _
    // Predicated region
    $region6: #{tpu_custom_call.1} parent=1 // pred_check
      _
    $region7: #{tpu_custom_call.1} parent=1 // pred_check_branch
      %14 = sbr.rel (0) target = $region9
    $region8: #{tpu_custom_call.1} parent=1 // pred_region
      _
    $region9: #{tpu_custom_call.1} parent=1 // pred_fallthru
      _
    // Predicated region
    $region10: #{tpu_custom_call.1} parent=1 // pred_check
      _
    $region11: #{tpu_custom_call.1} parent=1 // pred_check_branch
      %16 = sbr.rel (0) target = $region13
    $region12: #{tpu_custom_call.1} parent=1 // pred_region
      _
    $region13: #{tpu_custom_call.1} parent=1 // pred_fallthru
      _
    // Predicated region
    $region14: #{tpu_custom_call.1} parent=1 // pred_check
      _
    $region15: #{tpu_custom_call.1} parent=1 // pred_check_branch
      %18 = sbr.rel (0) target = $region17
    $region16: #{tpu_custom_call.1} parent=1 // pred_region
      _
    $region17: #{tpu_custom_call.1} parent=1 // pred_fallthru
      _
    // Predicated region
    $region18: #{tpu_custom_call.1} parent=1 // pred_check
      _
    $region19: #{tpu_custom_call.1} parent=1 // pred_check_branch
      %20 = sbr.rel (0) target = $region21
    $region20: #{tpu_custom_call.1} parent=1 // pred_region
      _
    $region21: #{tpu_custom_call.1} parent=1 // pred_fallthru
      _
    %v21 = vld [vmem:[%s0] sm:$0xff]
    %v22 = vld [vmem:[%s0 + $0x8] sm:$0xff]
    %v23 = vld [vmem:[%s1] sm:$0xff]
    %v24 = vld [vmem:[%s2] sm:$0x1]
    %v26 = vlaneseq
    %v27 = vshrl.u32 %v26, 7
    %v28 = vsub.s32 0, %v27
    %v29 = vrot.slane %v24, %v28
    %vm31 = vcmask 261120
    %v33 = vsel %vm31, %v21, 0
    %v36 = vsel %vm31, %v22, 0
    %v39 = vsel %vm31, %v23, 0
    %41 = vmatprep.subr.mxu0 0.0
    %42 = vmatpush1.xpose.msra.mxu0 %v39
    %43 = vmatprep.subr.mxu0 0.0
    %44 = vmatpush1.xpose.msra.mxu0 0.0
    %45 = vmatprep.subr.mxu0 0.0
    %46 = vmatpush1.xpose.msra.mxu0 0.0
    %47 = vmatprep.subr.mxu0 0.0
    %48 = vmatpush1.xpose.msra.mxu0 0.0
    %49 = vmatprep.subr.mxu0 0.0
    %50 = vmatpush1.xpose.msra.mxu0 0.0
    %51 = vmatprep.subr.mxu0 0.0
    %52 = vmatpush1.xpose.msra.mxu0 0.0
    %53 = vmatprep.subr.mxu0 0.0
    %54 = vmatpush1.xpose.msra.mxu0 0.0
    %55 = vmatprep.subr.mxu0 0.0
    %56 = vmatpush1.xpose.msra.mxu0 0.0
    %57 = vmatprep.subr.mxu0 0.0
    %58 = vmatpush1.xpose.msra.mxu0 0.0
    %59 = vmatprep.subr.mxu0 0.0
    %60 = vmatpush1.xpose.msra.mxu0 0.0
    %61 = vmatprep.subr.mxu0 0.0
    %62 = vmatpush1.xpose.msra.mxu0 0.0
    %63 = vmatprep.subr.mxu0 0.0
    %64 = vmatpush1.xpose.msra.mxu0 0.0
    %65 = vmatprep.subr.mxu0 0.0
    %66 = vmatpush1.xpose.msra.mxu0 0.0
    %67 = vmatprep.subr.mxu0 0.0
    %68 = vmatpush1.xpose.msra.mxu0 0.0
    %69 = vmatprep.subr.mxu0 0.0
    %70 = vmatpush1.xpose.msra.mxu0 0.0
    %71 = vmatprep.subr.mxu0 0.0
    %72 = vmatpush1.xpose.msra.mxu0 0.0
    %73 = vmatprep.subr.mxu0 0.0
    %74 = vmatpush1.xpose.msra.mxu0 0.0
    %75 = vmatprep.subr.mxu0 0.0
    %76 = vmatpush1.xpose.msra.mxu0 0.0
    %77 = vmatprep.subr.mxu0 0.0
    %78 = vmatpush1.xpose.msra.mxu0 0.0
    %79 = vmatprep.subr.mxu0 0.0
    %80 = vmatpush1.xpose.msra.mxu0 0.0
    %81 = vmatprep.subr.mxu0 0.0
    %82 = vmatpush1.xpose.msra.mxu0 0.0
    %83 = vmatprep.subr.mxu0 0.0
    %84 = vmatpush1.xpose.msra.mxu0 0.0
    %85 = vmatprep.subr.mxu0 0.0
    %86 = vmatpush1.xpose.msra.mxu0 0.0
    %87 = vmatprep.subr.mxu0 0.0
    %88 = vmatpush1.xpose.msra.mxu0 0.0
    %89 = vmatprep.subr.mxu0 0.0
    %90 = vmatpush1.xpose.msra.mxu0 0.0
    %91 = vmatprep.subr.mxu0 0.0
    %92 = vmatpush1.xpose.msra.mxu0 0.0
    %93 = vmatprep.subr.mxu0 0.0
    %94 = vmatpush1.xpose.msra.mxu0 0.0
    %95 = vmatprep.subr.mxu0 0.0
    %96 = vmatpush1.xpose.msra.mxu0 0.0
    %97 = vmatprep.subr.mxu0 0.0
    %98 = vmatpush1.xpose.msra.mxu0 0.0
    %99 = vmatprep.subr.mxu0 0.0
    %100 = vmatpush1.xpose.msra.mxu0 0.0
    %101 = vmatprep.subr.mxu0 0.0
    %102 = vmatpush1.xpose.msra.mxu0 0.0
    %103 = vmatprep.subr.mxu0 0.0
    %104 = vmatpush1.xpose.msra.mxu0 0.0
    %105 = vmatprep.mubr.f32.mxu0 0.0
    %106 = vmatmul.mubr.f32.gmra.mrb[0].mxu0 %v33
    %v107 = vpop.f32.mrb[0].mxu0
    %v108 = vadd.f32 %v29, %v107
    %v109 = vpop.f32.mrb[0].mxu0
    %110 = vmatprep.mubr.f32.mxu0 0.0
    %111 = vmatmul.mubr.f32.gmra.mrb[0].mxu0 %v36
    %v112 = vpop.f32.mrb[0].mxu0
    %v113 = vadd.f32 %v29, %v112
    %v114 = vpop.f32.mrb[0].mxu0
    %115 = vdwg.mxu0
    %v116 = vmax.f32 %v108, 0.0
    %v117 = vmax.f32 %v113, 0.0
    %v118 = vld [vmem:[%s3] sm:$0xff]
    %v119 = vld [vmem:[%s3 + $0x8] sm:$0xff]
    %v120 = vld [vmem:[%s3 + $0x10] sm:$0xff]
    %v121 = vld [vmem:[%s3 + $0x18] sm:$0xff]
    %v122 = vld [vmem:[%s4] sm:$0x1]
    %v124 = vlaneseq
    %v125 = vshrl.u32 %v124, 7
    %v126 = vsub.s32 0, %v125
    %v127 = vrot.slane %v122, %v126
    %vm129 = vcmask 64512
    %v131 = vsel %vm129, %v116, 0
    %v134 = vsel %vm129, %v117, 0
    %v137 = vsel %vm129, %v118, 0
    %v140 = vsel %vm129, %v119, 0
    %v143 = vsel %vm129, %v120, 0
    %v146 = vsel %vm129, %v121, 0
    %148 = vmatprep.subr.mxu0 0.0
    %149 = vmatpush1.xpose.msra.mxu0 %v137
    %150 = vmatprep.subr.mxu0 0.0
    %151 = vmatpush1.xpose.msra.mxu0 %v140
    %152 = vmatprep.subr.mxu0 0.0
    %153 = vmatpush1.xpose.msra.mxu0 %v143
    %154 = vmatprep.subr.mxu0 0.0
    %155 = vmatpush1.xpose.msra.mxu0 %v146
    %156 = vmatprep.subr.mxu0 0.0
    %157 = vmatpush1.xpose.msra.mxu0 0.0
    %158 = vmatprep.subr.mxu0 0.0
    %159 = vmatpush1.xpose.msra.mxu0 0.0
    %160 = vmatprep.subr.mxu0 0.0
    %161 = vmatpush1.xpose.msra.mxu0 0.0
    %162 = vmatprep.subr.mxu0 0.0
    %163 = vmatpush1.xpose.msra.mxu0 0.0
    %164 = vmatprep.subr.mxu0 0.0
    %165 = vmatpush1.xpose.msra.mxu0 0.0
    %166 = vmatprep.subr.mxu0 0.0
    %167 = vmatpush1.xpose.msra.mxu0 0.0
    %168 = vmatprep.subr.mxu0 0.0
    %169 = vmatpush1.xpose.msra.mxu0 0.0
    %170 = vmatprep.subr.mxu0 0.0
    %171 = vmatpush1.xpose.msra.mxu0 0.0
    %172 = vmatprep.subr.mxu0 0.0
    %173 = vmatpush1.xpose.msra.mxu0 0.0
    %174 = vmatprep.subr.mxu0 0.0
    %175 = vmatpush1.xpose.msra.mxu0 0.0
    %176 = vmatprep.subr.mxu0 0.0
    %177 = vmatpush1.xpose.msra.mxu0 0.0
    %178 = vmatprep.subr.mxu0 0.0
    %179 = vmatpush1.xpose.msra.mxu0 0.0
    %180 = vmatprep.subr.mxu0 0.0
    %181 = vmatpush1.xpose.msra.mxu0 0.0
    %182 = vmatprep.subr.mxu0 0.0
    %183 = vmatpush1.xpose.msra.mxu0 0.0
    %184 = vmatprep.subr.mxu0 0.0
    %185 = vmatpush1.xpose.msra.mxu0 0.0
    %186 = vmatprep.subr.mxu0 0.0
    %187 = vmatpush1.xpose.msra.mxu0 0.0
    %188 = vmatprep.subr.mxu0 0.0
    %189 = vmatpush1.xpose.msra.mxu0 0.0
    %190 = vmatprep.subr.mxu0 0.0
    %191 = vmatpush1.xpose.msra.mxu0 0.0
    %192 = vmatprep.subr.mxu0 0.0
    %193 = vmatpush1.xpose.msra.mxu0 0.0
    %194 = vmatprep.subr.mxu0 0.0
    %195 = vmatpush1.xpose.msra.mxu0 0.0
    %196 = vmatprep.subr.mxu0 0.0
    %197 = vmatpush1.xpose.msra.mxu0 0.0
    %198 = vmatprep.subr.mxu0 0.0
    %199 = vmatpush1.xpose.msra.mxu0 0.0
    %200 = vmatprep.subr.mxu0 0.0
    %201 = vmatpush1.xpose.msra.mxu0 0.0
    %202 = vmatprep.subr.mxu0 0.0
    %203 = vmatpush1.xpose.msra.mxu0 0.0
    %204 = vmatprep.subr.mxu0 0.0
    %205 = vmatpush1.xpose.msra.mxu0 0.0
    %206 = vmatprep.subr.mxu0 0.0
    %207 = vmatpush1.xpose.msra.mxu0 0.0
    %208 = vmatprep.subr.mxu0 0.0
    %209 = vmatpush1.xpose.msra.mxu0 0.0
    %210 = vmatprep.subr.mxu0 0.0
    %211 = vmatpush1.xpose.msra.mxu0 0.0
    %212 = vmatprep.mubr.f32.mxu0 0.0
    %213 = vmatmul.mubr.f32.gmra.mrb[0].mxu0 %v131
    %v214 = vpop.f32.mrb[0].mxu0
    %v215 = vadd.f32 %v127, %v214
    %v216 = vpop.f32.mrb[0].mxu0
    %217 = vmatprep.mubr.f32.mxu0 0.0
    %218 = vmatmul.mubr.f32.gmra.mrb[0].mxu0 %v134
    %v219 = vpop.f32.mrb[0].mxu0
    %v220 = vadd.f32 %v127, %v219
    %v221 = vpop.f32.mrb[0].mxu0
    %222 = vdwg.mxu0
    %v223 = vadd.f32 %v215, %v21
    %v224 = vadd.f32 %v220, %v22
    %225 = vst.msk [vmem:[#allocation2] sm:$0xff] %vm31, %v223
    %226 = vst.msk [vmem:[#allocation2 + $0x8] sm:$0xff] %vm31, %v224
    // Predicated region
    $region22: #{tpu_custom_call.1} parent=1 // pred_check
      _
    $region23: #{tpu_custom_call.1} parent=1 // pred_check_branch
      %228 = sbr.rel (0) target = $region25
    $region24: #{tpu_custom_call.1} parent=1 // pred_region
      %s230 = ssub.s32 256, 256
      %231 = vsyncadd [#allocation3], %s230
      %s232 = sshll.u32 [#allocation2], 4
      %s233 = int_to_ptr.vmem [resolvable:$true] %s232
      %238 = dma.vmem_to_hbm [thread:$0]  %s233, 256, %s5, [#allocation3], 128, 128, 8
    $region25: #{tpu_custom_call.1} parent=1 // pred_fallthru
      _
    // Predicated region
    $region26: #{tpu_custom_call.1} parent=1 // pred_check
      _
    $region27: #{tpu_custom_call.1} parent=1 // pred_check_branch
      %240 = sbr.rel (0) target = $region29
    $region28: #{tpu_custom_call.1} parent=1 // pred_region
      %241 = dma.done [#allocation3], 256
    $region29: #{tpu_custom_call.1} parent=1 // pred_fallthru
      _
    %242 = vsyncpa [#allocation3], 1

</llo_original>
